<compile_context>
chip_gen: v7x
topology: tpu7x:2x2x1
jax: 0.10.0
libtpu: 0.0.40
codegen_flags: <defaults>
</compile_context>

<pallas_src>
import functools
import math

import jax
import jax.numpy as jnp
from jax.experimental import pallas as pl
from jax.experimental.pallas import tpu as pltpu


def _conv1d_kernel(x_ref, w_ref, o_ref, *, K, pad, L_out, compute_dtype):
    # x_ref: (tb, L, C_in)       input rows in their HBM dtype (e.g. f32)
    # w_ref: (K, C_in, C_out)    per-tap weights (compute dtype, grid-invariant)
    # o_ref: (tb, L_out, C_out)  output rows
    x = x_ref[...].astype(compute_dtype)              # cast in VMEM (no HBM pass)
    tb, _, C_in = x.shape
    C_out = o_ref.shape[-1]
    if pad:
        z = jnp.zeros((tb, pad, C_in), dtype=compute_dtype)
        x = jnp.concatenate([z, x, z], axis=1)         # (tb, L + 2*pad, C_in)
    acc = None
    for k in range(K):                                 # static unroll, K is small
        xk = x[:, k:k + L_out, :]                      # (tb, L_out, C_in) tap slice
        wk = jnp.broadcast_to(w_ref[k], (tb, C_in, C_out))
        pk = jnp.einsum("blc,bco->blo", xk, wk,
                        preferred_element_type=jnp.float32)
        acc = pk if acc is None else acc + pk
    o_ref[...] = acc.astype(o_ref.dtype)


def basic_conv_forward(x, weight, *, compute_dtype=jnp.bfloat16, out_dtype=None,
                       target_rows=2048, vmem_budget_bytes=8 * 2**20, tb=None):
    """BasicConv.forward with bn=None, act=None, bias=False, dropout=0.0, groups=1.

    Args:
      x:      (B, L, C_in)      float32 (or bf16)
      weight: (C_out, C_in, K)  PyTorch Conv1d weight layout
    Returns:
      (B, L_out, C_out) with L_out = L + 2*(K//2) - K + 1 (== L for odd K),
      in x.dtype unless out_dtype is given.
    """
    B, L, C_in = x.shape
    C_out, C_in_w, K = weight.shape
    assert C_in_w == C_in, (C_in_w, C_in)
    pad = K // 2
    L_out = L + 2 * pad - K + 1
    out_dtype = x.dtype if out_dtype is None else out_dtype

    # Per-tap weights in the order the kernel consumes them:
    #   w_taps[k, ci, co] = weight[co, ci, k]
    w_taps = jnp.transpose(weight, (2, 1, 0)).astype(compute_dtype)

    # ---- rows-per-step: big enough to amortize per-grid-step overhead, small
    #      enough to keep the double-buffered working set a few MiB ----------
    in_b = jnp.dtype(x.dtype).itemsize
    out_b = jnp.dtype(out_dtype).itemsize
    c_b = jnp.dtype(compute_dtype).itemsize
    per_seq = (2 * L * C_in * in_b                 # double-buffered input block
               + 2 * L_out * C_out * out_b         # double-buffered output block
               + (L + 2 * pad) * C_in * c_b        # in-kernel padded copy
               + 2 * L_out * C_in * c_b            # live tap slices
               + 2 * L_out * C_out * 4)            # f32 accumulator + product
    if tb is None:
        tb = min(B,
                 max(1, target_rows // max(L_out, 1)),
                 max(1, vmem_budget_bytes // max(per_seq, 1)))
    tb = max(1, min(int(tb), B))
    grid = (pl.cdiv(B, tb),)                       # ragged tail masked by Pallas

    vmem_need = tb * per_seq + 2 * K * C_in * C_out * c_b
    vmem_limit = int(min(max(2 * vmem_need, 8 * 2**20), 32 * 2**20))

    kernel = functools.partial(_conv1d_kernel, K=K, pad=pad, L_out=L_out,
                               compute_dtype=compute_dtype)

    return pl.pallas_call(
        kernel,
        out_shape=jax.ShapeDtypeStruct((B, L_out, C_out), out_dtype),
        grid_spec=pltpu.PrefetchScalarGridSpec(
            num_scalar_prefetch=0,
            grid=grid,
            in_specs=[
                # Trailing dims equal the full array dims -> no (8,128) padding.
                pl.BlockSpec((tb, L, C_in), lambda s: (s, 0, 0)),
                pl.BlockSpec((K, C_in, C_out), lambda s: (0, 0, 0)),
            ],
            out_specs=pl.BlockSpec((tb, L_out, C_out), lambda s: (s, 0, 0)),
        ),
        compiler_params=pltpu.CompilerParams(
            dimension_semantics=("parallel",),      # megacore-shardable on v7x
            vmem_limit_bytes=vmem_limit,
        ),
    )(x, w_taps)


def _reference(x, weight):
    """Pure-JAX reference matching nn.Conv1d(x.transpose(-1,-2)).transpose(-1,-2)."""
    K = weight.shape[-1]
    pad = K // 2
    x_ncw = jnp.transpose(x, (0, 2, 1))  # (B, C_in, L)
    y = jax.lax.conv_general_dilated(
        x_ncw, weight,
        window_strides=(1,),
        padding=[(pad, pad)],
        dimension_numbers=("NCH", "OIH", "NCH"),
        precision=jax.lax.Precision.HIGHEST,
    )
    return jnp.transpose(y, (0, 2, 1))  # (B, L_out, C_out)


if __name__ == "__main__":
    key = jax.random.PRNGKey(0)
    k_x, k_w, k_x2, k_w2 = jax.random.split(key, 4)

    # --- Test 1: small shapes consistent with the module: B=2, L=16, c_in=4,
    #     c_out=8, K=3 (single grid step).
    B, L, C_in, C_out, K = 2, 16, 4, 8, 3
    x = jax.random.normal(k_x, (B, L, C_in), dtype=jnp.float32)
    bound = 1.0 / math.sqrt(C_in * K)
    w = jax.random.uniform(k_w, (C_out, C_in, K), jnp.float32,
                           minval=-bound, maxval=bound)

    out = jax.block_until_ready(basic_conv_forward(x, w))
    ref = jax.block_until_ready(_reference(x, w))
    # bf16-rounded reference: products identical to the MXU's bf16xbf16->f32;
    # only the f32 accumulation order differs.
    ref_bf16 = jax.block_until_ready(_reference(
        x.astype(jnp.bfloat16).astype(jnp.float32),
        w.astype(jnp.bfloat16).astype(jnp.float32)))
    assert out.shape == ref.shape, (out.shape, ref.shape)
    assert out.dtype == x.dtype, out.dtype
    assert jnp.allclose(out, ref_bf16, atol=2e-3, rtol=2e-3), "mismatch vs bf16 ref"
    assert jnp.allclose(out, ref, atol=5e-2, rtol=5e-2), "mismatch vs f32 ref"

    # --- Test 2: multi-step grid with a ragged last batch block (B % tb != 0),
    #     square channels as used by M_KAN (c_in == c_out == d_model).
    B2, L2, C2 = 10, 28, 16
    x2 = jax.random.normal(k_x2, (B2, L2, C2), dtype=jnp.float32)
    bound2 = 1.0 / math.sqrt(C2 * K)
    w2 = jax.random.uniform(k_w2, (C2, C2, K), jnp.float32,
                            minval=-bound2, maxval=bound2)
    out2 = jax.block_until_ready(basic_conv_forward(x2, w2, tb=3))
    ref2_bf16 = jax.block_until_ready(_reference(
        x2.astype(jnp.bfloat16).astype(jnp.float32),
        w2.astype(jnp.bfloat16).astype(jnp.float32)))
    assert out2.shape == (B2, L2, C2), out2.shape
    assert jnp.allclose(out2, ref2_bf16, atol=2e-3, rtol=2e-3), "ragged-grid mismatch"

    # bn / act are None with the default constructor flags; dropout p=0.0 is
    # identity, so the conv is the entire forward pass of BasicConv.
    print("KERNEL_OK")
</pallas_src>

<mosaic_0001>
module attributes {stable_mosaic.version = 11 : i64} {
  func.func @_conv1d_kernel(%arg0: i32, %arg1: memref<2x16x4xf32, #tpu.memory_space<vmem>>, %arg2: memref<3x4x8xbf16, #tpu.memory_space<vmem>>, %arg3: memref<2x16x8xf32, #tpu.memory_space<vmem>>) attributes {dimension_semantics = [#tpu.dimension_semantics<parallel>], iteration_bounds = array<i64: 1>, scalar_prefetch = 0 : i64, scratch_operands = 0 : i64, tpu.core_type = #tpu.core_type<tc>, window_params = [{transform_indices = @transform_0, window_bounds = array<i64: 2, 16, 4>}, {pipeline_mode = #tpu.pipeline_mode<synchronous>, transform_indices = @transform_1, window_bounds = array<i64: 3, 4, 8>}, {transform_indices = @transform_2, window_bounds = array<i64: 2, 16, 8>}]} {
    %c0 = arith.constant 0 : index
    %c0_0 = arith.constant 0 : index
    %c0_1 = arith.constant 0 : index
    %0 = vector.load %arg1[%c0, %c0_0, %c0_1] : memref<2x16x4xf32, #tpu.memory_space<vmem>>, vector<2x16x4xf32>
    %1 = arith.truncf %0 : vector<2x16x4xf32> to vector<2x16x4xbf16>
    %cst = arith.constant 0.000000e+00 : bf16
    %2 = vector.broadcast %cst : bf16 to vector<2x1x4xbf16>
    %3 = tpu.concatenate %2, %1, %2 in 1 : vector<2x1x4xbf16>, vector<2x16x4xbf16>, vector<2x1x4xbf16> -> vector<2x18x4xbf16>
    %4 = vector.extract_strided_slice %3 {offsets = [0, 0, 0], sizes = [2, 16, 4], strides = [1, 1, 1]} : vector<2x18x4xbf16> to vector<2x16x4xbf16>
    %c0_2 = arith.constant 0 : index
    %c0_3 = arith.constant 0 : index
    %c0_4 = arith.constant 0 : index
    %5 = vector.load %arg2[%c0_2, %c0_3, %c0_4] : memref<3x4x8xbf16, #tpu.memory_space<vmem>>, vector<1x4x8xbf16>
    %6 = vector.shape_cast %5 : vector<1x4x8xbf16> to vector<4x8xbf16>
    %7 = vector.shape_cast %6 : vector<4x8xbf16> to vector<1x4x8xbf16>
    %8 = vector.broadcast %7 : vector<1x4x8xbf16> to vector<2x4x8xbf16>
    "tpu.trace_start"() <{level = 10 : i32, message = "blc,bco->blo"}> : () -> ()
    %cst_5 = arith.constant dense<0.000000e+00> : vector<2x16x8xf32>
    %9 = tpu.matmul %4, %8, %cst_5 {dimension_numbers = #tpu.dot_dimension_numbers<[2], [1], [1], [2], [0, 0, 0, 1, 1, 2], [0], [0]>} : vector<2x16x4xbf16>, vector<2x4x8xbf16>, vector<2x16x8xf32> -> vector<2x16x8xf32>
    "tpu.trace_stop"() : () -> ()
    %10 = vector.extract_strided_slice %3 {offsets = [0, 1, 0], sizes = [2, 16, 4], strides = [1, 1, 1]} : vector<2x18x4xbf16> to vector<2x16x4xbf16>
    %c1 = arith.constant 1 : index
    %c0_6 = arith.constant 0 : index
    %c0_7 = arith.constant 0 : index
    %11 = vector.load %arg2[%c1, %c0_6, %c0_7] : memref<3x4x8xbf16, #tpu.memory_space<vmem>>, vector<1x4x8xbf16>
    %12 = vector.shape_cast %11 : vector<1x4x8xbf16> to vector<4x8xbf16>
    %13 = vector.shape_cast %12 : vector<4x8xbf16> to vector<1x4x8xbf16>
    %14 = vector.broadcast %13 : vector<1x4x8xbf16> to vector<2x4x8xbf16>
    "tpu.trace_start"() <{level = 10 : i32, message = "blc,bco->blo"}> : () -> ()
    %cst_8 = arith.constant dense<0.000000e+00> : vector<2x16x8xf32>
    %15 = tpu.matmul %10, %14, %cst_8 {dimension_numbers = #tpu.dot_dimension_numbers<[2], [1], [1], [2], [0, 0, 0, 1, 1, 2], [0], [0]>} : vector<2x16x4xbf16>, vector<2x4x8xbf16>, vector<2x16x8xf32> -> vector<2x16x8xf32>
    "tpu.trace_stop"() : () -> ()
    %16 = arith.addf %9, %15 : vector<2x16x8xf32>
    %17 = vector.extract_strided_slice %3 {offsets = [0, 2, 0], sizes = [2, 16, 4], strides = [1, 1, 1]} : vector<2x18x4xbf16> to vector<2x16x4xbf16>
    %c2 = arith.constant 2 : index
    %c0_9 = arith.constant 0 : index
    %c0_10 = arith.constant 0 : index
    %18 = vector.load %arg2[%c2, %c0_9, %c0_10] : memref<3x4x8xbf16, #tpu.memory_space<vmem>>, vector<1x4x8xbf16>
    %19 = vector.shape_cast %18 : vector<1x4x8xbf16> to vector<4x8xbf16>
    %20 = vector.shape_cast %19 : vector<4x8xbf16> to vector<1x4x8xbf16>
    %21 = vector.broadcast %20 : vector<1x4x8xbf16> to vector<2x4x8xbf16>
    "tpu.trace_start"() <{level = 10 : i32, message = "blc,bco->blo"}> : () -> ()
    %cst_11 = arith.constant dense<0.000000e+00> : vector<2x16x8xf32>
    %22 = tpu.matmul %17, %21, %cst_11 {dimension_numbers = #tpu.dot_dimension_numbers<[2], [1], [1], [2], [0, 0, 0, 1, 1, 2], [0], [0]>} : vector<2x16x4xbf16>, vector<2x4x8xbf16>, vector<2x16x8xf32> -> vector<2x16x8xf32>
    "tpu.trace_stop"() : () -> ()
    %23 = arith.addf %16, %22 : vector<2x16x8xf32>
    %c0_12 = arith.constant 0 : index
    %c0_13 = arith.constant 0 : index
    %c0_14 = arith.constant 0 : index
    %24 = vector.load %arg3[%c0_12, %c0_13, %c0_14] : memref<2x16x8xf32, #tpu.memory_space<vmem>>, vector<2x16x8xf32>
    tpu.vector_store %arg3[%c0_12, %c0_13, %c0_14], %23 {strides = array<i32>} : memref<2x16x8xf32, #tpu.memory_space<vmem>>, vector<2x16x8xf32>,
    return
  }
  func.func @transform_0(%arg0: i32) -> (i32, i32, i32) {
    %c0_i32 = arith.constant 0 : i32
    %c0_i32_0 = arith.constant 0 : i32
    %c0_i32_1 = arith.constant 0 : i32
    return %arg0, %c0_i32, %c0_i32_0 : i32, i32, i32
  }
  func.func @transform_1(%arg0: i32) -> (i32, i32, i32) {
    %c0_i32 = arith.constant 0 : i32
    %c0_i32_0 = arith.constant 0 : i32
    %c0_i32_1 = arith.constant 0 : i32
    %c0_i32_2 = arith.constant 0 : i32
    return %c0_i32, %c0_i32_0, %c0_i32_1 : i32, i32, i32
  }
  func.func @transform_2(%arg0: i32) -> (i32, i32, i32) {
    %c0_i32 = arith.constant 0 : i32
    %c0_i32_0 = arith.constant 0 : i32
    %c0_i32_1 = arith.constant 0 : i32
    return %arg0, %c0_i32, %c0_i32_0 : i32, i32, i32
  }
}

</mosaic_0001>

<llo_original>
// kernel: tpu_custom_call.1
$region0: #{tpu_custom_call.1}
  #allocation0 [shape = 'u32[]', space=smem, size = 0x4, offset = 0x4, fixed_abs, tag = 'smem constant byte address 0x4 - core index']
  #allocation1 [shape = 'u32[144,128]{1,0:T(1,128)}', space=vmem, size = 0x12000, scoped, tag = 'internal scratch']
  %s0 = inlined_call_operand.vmem [shape: f32[2,16,4], index: 0, kind: input, shape index: {}]
  %s1 = inlined_call_operand.vmem [shape: bf16[3,4,8], index: 1, kind: input, shape index: {}]
  %s2 = inlined_call_operand.vmem [shape: f32[2,16,8], index: 2, kind: output, shape index: {}]
  %s3 = sld [smem:[#allocation0]]
  $region18: #{tpu_custom_call.1} parent=0
    _
  %s5 = ssub.s32 1, %s3
  %s6 = scalar_select 0, %s5, %s3
  // Predicated region
  $region2: #{tpu_custom_call.1} parent=0 // pred_check
    _
  $region3: #{tpu_custom_call.1} parent=0 // pred_check_branch
    %8 = sbr.rel (0) target = $region5
  $region4: #{tpu_custom_call.1} parent=0 // pred_region
    _
  $region5: #{tpu_custom_call.1} parent=0 // pred_fallthru
    _
  // Predicated region
  $region6: #{tpu_custom_call.1} parent=0 // pred_check
    _
  $region7: #{tpu_custom_call.1} parent=0 // pred_check_branch
    %10 = sbr.rel (0) target = $region9
  $region8: #{tpu_custom_call.1} parent=0 // pred_region
    _
  $region9: #{tpu_custom_call.1} parent=0 // pred_fallthru
    _
  %v12 = vld [vmem:[%s0] sm:$0xff]
  %v13 = vld [vmem:[%s0 + $0x8] sm:$0xff]
  %v14 = vld [vmem:[%s0 + $0x10] sm:$0xff]
  %v15 = vld [vmem:[%s0 + $0x18] sm:$0xff]
  %v16 = vpack.c.bf16 %v13, %v12
  %v17 = vpack.c.bf16 %v15, %v14
  %v19 = vshrl.u32 %v16, 16
  %v21 = vrot.slane %v19, 7
  %v22 = vshll.u32 %v16, 16
  %v24 = vor.u32 %v21, %v22
  %v26 = vshrl.u32 %v17, 16
  %v28 = vrot.slane %v26, 7
  %v29 = vshll.u32 %v17, 16
  %v31 = vor.u32 %v28, %v29
  %vm36 = vcmask 1040384
  %vm37 = vsmask.f32 256
  %vm38 = vmand %vm36, %vm37
  %v39 = vsel %vm38, 0, %v24
  %v40 = vsel %vm38, 0, %v31
  %v41 = vsel %vm38, %v21, 0
  %v42 = vsel %vm38, %v28, 0
  %v43 = vld [vmem:[%s1] sm:$0x3]
  %s44 = scalar_lea.vmem %s1, 2
  %v45 = vld [vmem:[%s44] sm:$0x3]
  %vm46 = vsmask.f32 7424
  %v48 = vshrl.u32 %v39, 16
  %v50 = vshll.u32 %v39, 16
  %v52 = vrot.slane %v50, 1
  %v53 = vor.u32 %v48, %v52
  %v55 = vshll.u32 %v41, 16
  %v57 = vrot.slane %v55, 1
  %v58 = vsel %vm46, %v53, %v57
  %vm59 = vcmask 31744
  %v61 = vsel %vm59, %v58, 0
  %vm63 = vcmask 1041408
  %v65 = vsel %vm63, %v45, 0
  %67 = vmatprep.subr.bf16.mxu0 0
  %68 = vmatpush1.bf16.msra.mxu0 %v65
  %69 = vmatprep.subr.bf16.mxu0 0
  %70 = vmatpush1.bf16.msra.mxu0 0
  %71 = vmatprep.subr.bf16.mxu0 0
  %72 = vmatpush1.bf16.msra.mxu0 0
  %73 = vmatprep.subr.bf16.mxu0 0
  %74 = vmatpush1.bf16.msra.mxu0 0
  %75 = vmatprep.subr.bf16.mxu0 0
  %76 = vmatpush1.bf16.msra.mxu0 0
  %77 = vmatprep.subr.bf16.mxu0 0
  %78 = vmatpush1.bf16.msra.mxu0 0
  %79 = vmatprep.subr.bf16.mxu0 0
  %80 = vmatpush1.bf16.msra.mxu0 0
  %81 = vmatprep.subr.bf16.mxu0 0
  %82 = vmatpush1.bf16.msra.mxu0 0
  %83 = vmatprep.subr.bf16.mxu0 0
  %84 = vmatpush1.bf16.msra.mxu0 0
  %85 = vmatprep.subr.bf16.mxu0 0
  %86 = vmatpush1.bf16.msra.mxu0 0
  %87 = vmatprep.subr.bf16.mxu0 0
  %88 = vmatpush1.bf16.msra.mxu0 0
  %89 = vmatprep.subr.bf16.mxu0 0
  %90 = vmatpush1.bf16.msra.mxu0 0
  %91 = vmatprep.subr.bf16.mxu0 0
  %92 = vmatpush1.bf16.msra.mxu0 0
  %93 = vmatprep.subr.bf16.mxu0 0
  %94 = vmatpush1.bf16.msra.mxu0 0
  %95 = vmatprep.subr.bf16.mxu0 0
  %96 = vmatpush1.bf16.msra.mxu0 0
  %97 = vmatprep.subr.bf16.mxu0 0
  %98 = vmatpush1.bf16.msra.mxu0 0
  %99 = vmatprep.mubr.bf16.mxu0 0
  %100 = vmatmul.mubr.bf16.gmra.mrb[0].mxu0 %v61
  %v101 = vpop.f32.mrb[0].mxu0
  %v102 = vadd.f32 0.0, %v101
  %v103 = vpop.f32.mrb[0].mxu0
  %v104 = vpop.f32.mrb[0].mxu0
  %v105 = vadd.f32 0.0, %v104
  %v106 = vpop.f32.mrb[0].mxu0
  %107 = vdwg.mxu0
  %v109 = vshrl.u32 %v40, 16
  %v111 = vshll.u32 %v40, 16
  %v113 = vrot.slane %v111, 1
  %v114 = vor.u32 %v109, %v113
  %v116 = vshll.u32 %v42, 16
  %v118 = vrot.slane %v116, 1
  %v119 = vsel %vm46, %v114, %v118
  %v121 = vsel %vm59, %v119, 0
  %123 = vmatprep.subr.bf16.mxu0 0
  %124 = vmatpush1.bf16.msra.mxu0 %v65
  %125 = vmatprep.subr.bf16.mxu0 0
  %126 = vmatpush1.bf16.msra.mxu0 0
  %127 = vmatprep.subr.bf16.mxu0 0
  %128 = vmatpush1.bf16.msra.mxu0 0
  %129 = vmatprep.subr.bf16.mxu0 0
  %130 = vmatpush1.bf16.msra.mxu0 0
  %131 = vmatprep.subr.bf16.mxu0 0
  %132 = vmatpush1.bf16.msra.mxu0 0
  %133 = vmatprep.subr.bf16.mxu0 0
  %134 = vmatpush1.bf16.msra.mxu0 0
  %135 = vmatprep.subr.bf16.mxu0 0
  %136 = vmatpush1.bf16.msra.mxu0 0
  %137 = vmatprep.subr.bf16.mxu0 0
  %138 = vmatpush1.bf16.msra.mxu0 0
  %139 = vmatprep.subr.bf16.mxu0 0
  %140 = vmatpush1.bf16.msra.mxu0 0
  %141 = vmatprep.subr.bf16.mxu0 0
  %142 = vmatpush1.bf16.msra.mxu0 0
  %143 = vmatprep.subr.bf16.mxu0 0
  %144 = vmatpush1.bf16.msra.mxu0 0
  %145 = vmatprep.subr.bf16.mxu0 0
  %146 = vmatpush1.bf16.msra.mxu0 0
  %147 = vmatprep.subr.bf16.mxu0 0
  %148 = vmatpush1.bf16.msra.mxu0 0
  %149 = vmatprep.subr.bf16.mxu0 0
  %150 = vmatpush1.bf16.msra.mxu0 0
  %151 = vmatprep.subr.bf16.mxu0 0
  %152 = vmatpush1.bf16.msra.mxu0 0
  %153 = vmatprep.subr.bf16.mxu0 0
  %154 = vmatpush1.bf16.msra.mxu0 0
  %155 = vmatprep.mubr.bf16.mxu0 0
  %156 = vmatmul.mubr.bf16.gmra.mrb[0].mxu0 %v121
  %v157 = vpop.f32.mrb[0].mxu0
  %v158 = vadd.f32 0.0, %v157
  %v159 = vpop.f32.mrb[0].mxu0
  %v160 = vpop.f32.mrb[0].mxu0
  %v161 = vadd.f32 0.0, %v160
  %v162 = vpop.f32.mrb[0].mxu0
  %163 = vdwg.mxu0
  %v164 = vsel %vm59, %v39, 0
  %v167 = vsel %vm63, %v43, 0
  %169 = vmatprep.subr.bf16.mxu0 0
  %170 = vmatpush1.bf16.msra.mxu0 %v167
  %171 = vmatprep.subr.bf16.mxu0 0
  %172 = vmatpush1.bf16.msra.mxu0 0
  %173 = vmatprep.subr.bf16.mxu0 0
  %174 = vmatpush1.bf16.msra.mxu0 0
  %175 = vmatprep.subr.bf16.mxu0 0
  %176 = vmatpush1.bf16.msra.mxu0 0
  %177 = vmatprep.subr.bf16.mxu0 0
  %178 = vmatpush1.bf16.msra.mxu0 0
  %179 = vmatprep.subr.bf16.mxu0 0
  %180 = vmatpush1.bf16.msra.mxu0 0
  %181 = vmatprep.subr.bf16.mxu0 0
  %182 = vmatpush1.bf16.msra.mxu0 0
  %183 = vmatprep.subr.bf16.mxu0 0
  %184 = vmatpush1.bf16.msra.mxu0 0
  %185 = vmatprep.subr.bf16.mxu0 0
  %186 = vmatpush1.bf16.msra.mxu0 0
  %187 = vmatprep.subr.bf16.mxu0 0
  %188 = vmatpush1.bf16.msra.mxu0 0
  %189 = vmatprep.subr.bf16.mxu0 0
  %190 = vmatpush1.bf16.msra.mxu0 0
  %191 = vmatprep.subr.bf16.mxu0 0
  %192 = vmatpush1.bf16.msra.mxu0 0
  %193 = vmatprep.subr.bf16.mxu0 0
  %194 = vmatpush1.bf16.msra.mxu0 0
  %195 = vmatprep.subr.bf16.mxu0 0
  %196 = vmatpush1.bf16.msra.mxu0 0
  %197 = vmatprep.subr.bf16.mxu0 0
  %198 = vmatpush1.bf16.msra.mxu0 0
  %199 = vmatprep.subr.bf16.mxu0 0
  %200 = vmatpush1.bf16.msra.mxu0 0
  %201 = vmatprep.mubr.bf16.mxu0 0
  %202 = vmatmul.mubr.bf16.gmra.mrb[0].mxu0 %v164
  %v203 = vpop.f32.mrb[0].mxu0
  %v204 = vadd.f32 %v102, %v203
  %v205 = vpop.f32.mrb[0].mxu0
  %v206 = vpop.f32.mrb[0].mxu0
  %v207 = vadd.f32 %v105, %v206
  %v208 = vpop.f32.mrb[0].mxu0
  %209 = vdwg.mxu0
  %v210 = vsel %vm59, %v40, 0
  %212 = vmatprep.subr.bf16.mxu0 0
  %213 = vmatpush1.bf16.msra.mxu0 %v167
  %214 = vmatprep.subr.bf16.mxu0 0
  %215 = vmatpush1.bf16.msra.mxu0 0
  %216 = vmatprep.subr.bf16.mxu0 0
  %217 = vmatpush1.bf16.msra.mxu0 0
  %218 = vmatprep.subr.bf16.mxu0 0
  %219 = vmatpush1.bf16.msra.mxu0 0
  %220 = vmatprep.subr.bf16.mxu0 0
  %221 = vmatpush1.bf16.msra.mxu0 0
  %222 = vmatprep.subr.bf16.mxu0 0
  %223 = vmatpush1.bf16.msra.mxu0 0
  %224 = vmatprep.subr.bf16.mxu0 0
  %225 = vmatpush1.bf16.msra.mxu0 0
  %226 = vmatprep.subr.bf16.mxu0 0
  %227 = vmatpush1.bf16.msra.mxu0 0
  %228 = vmatprep.subr.bf16.mxu0 0
  %229 = vmatpush1.bf16.msra.mxu0 0
  %230 = vmatprep.subr.bf16.mxu0 0
  %231 = vmatpush1.bf16.msra.mxu0 0
  %232 = vmatprep.subr.bf16.mxu0 0
  %233 = vmatpush1.bf16.msra.mxu0 0
  %234 = vmatprep.subr.bf16.mxu0 0
  %235 = vmatpush1.bf16.msra.mxu0 0
  %236 = vmatprep.subr.bf16.mxu0 0
  %237 = vmatpush1.bf16.msra.mxu0 0
  %238 = vmatprep.subr.bf16.mxu0 0
  %239 = vmatpush1.bf16.msra.mxu0 0
  %240 = vmatprep.subr.bf16.mxu0 0
  %241 = vmatpush1.bf16.msra.mxu0 0
  %242 = vmatprep.subr.bf16.mxu0 0
  %243 = vmatpush1.bf16.msra.mxu0 0
  %244 = vmatprep.mubr.bf16.mxu0 0
  %245 = vmatmul.mubr.bf16.gmra.mrb[0].mxu0 %v210
  %v246 = vpop.f32.mrb[0].mxu0
  %v247 = vadd.f32 %v158, %v246
  %v248 = vpop.f32.mrb[0].mxu0
  %v249 = vpop.f32.mrb[0].mxu0
  %v250 = vadd.f32 %v161, %v249
  %v251 = vpop.f32.mrb[0].mxu0
  %252 = vdwg.mxu0
  %s253 = scalar_lea.vmem %s1, 4
  %v254 = vld [vmem:[%s253] sm:$0x3]
  %vm257 = vcmask 1046528
  %v258 = vrot.slane %v39, 1
  %v259 = vrot.slane %v41, 1
  %v260 = vsel %vm257, %v258, %v259
  %v262 = vsel %vm59, %v260, 0
  %v265 = vsel %vm63, %v254, 0
  %267 = vmatprep.subr.bf16.mxu0 0
  %268 = vmatpush1.bf16.msra.mxu0 %v265
  %269 = vmatprep.subr.bf16.mxu0 0
  %270 = vmatpush1.bf16.msra.mxu0 0
  %271 = vmatprep.subr.bf16.mxu0 0
  %272 = vmatpush1.bf16.msra.mxu0 0
  %273 = vmatprep.subr.bf16.mxu0 0
  %274 = vmatpush1.bf16.msra.mxu0 0
  %275 = vmatprep.subr.bf16.mxu0 0
  %276 = vmatpush1.bf16.msra.mxu0 0
  %277 = vmatprep.subr.bf16.mxu0 0
  %278 = vmatpush1.bf16.msra.mxu0 0
  %279 = vmatprep.subr.bf16.mxu0 0
  %280 = vmatpush1.bf16.msra.mxu0 0
  %281 = vmatprep.subr.bf16.mxu0 0
  %282 = vmatpush1.bf16.msra.mxu0 0
  %283 = vmatprep.subr.bf16.mxu0 0
  %284 = vmatpush1.bf16.msra.mxu0 0
  %285 = vmatprep.subr.bf16.mxu0 0
  %286 = vmatpush1.bf16.msra.mxu0 0
  %287 = vmatprep.subr.bf16.mxu0 0
  %288 = vmatpush1.bf16.msra.mxu0 0
  %289 = vmatprep.subr.bf16.mxu0 0
  %290 = vmatpush1.bf16.msra.mxu0 0
  %291 = vmatprep.subr.bf16.mxu0 0
  %292 = vmatpush1.bf16.msra.mxu0 0
  %293 = vmatprep.subr.bf16.mxu0 0
  %294 = vmatpush1.bf16.msra.mxu0 0
  %295 = vmatprep.subr.bf16.mxu0 0
  %296 = vmatpush1.bf16.msra.mxu0 0
  %297 = vmatprep.subr.bf16.mxu0 0
  %298 = vmatpush1.bf16.msra.mxu0 0
  %299 = vmatprep.mubr.bf16.mxu0 0
  %300 = vmatmul.mubr.bf16.gmra.mrb[0].mxu0 %v262
  %v301 = vpop.f32.mrb[0].mxu0
  %v302 = vadd.f32 0.0, %v301
  %v303 = vpop.f32.mrb[0].mxu0
  %v304 = vpop.f32.mrb[0].mxu0
  %v305 = vadd.f32 0.0, %v304
  %v306 = vpop.f32.mrb[0].mxu0
  %307 = vdwg.mxu0
  %v310 = vrot.slane %v40, 1
  %v311 = vrot.slane %v42, 1
  %v312 = vsel %vm257, %v310, %v311
  %v314 = vsel %vm59, %v312, 0
  %316 = vmatprep.subr.bf16.mxu0 0
  %317 = vmatpush1.bf16.msra.mxu0 %v265
  %318 = vmatprep.subr.bf16.mxu0 0
  %319 = vmatpush1.bf16.msra.mxu0 0
  %320 = vmatprep.subr.bf16.mxu0 0
  %321 = vmatpush1.bf16.msra.mxu0 0
  %322 = vmatprep.subr.bf16.mxu0 0
  %323 = vmatpush1.bf16.msra.mxu0 0
  %324 = vmatprep.subr.bf16.mxu0 0
  %325 = vmatpush1.bf16.msra.mxu0 0
  %326 = vmatprep.subr.bf16.mxu0 0
  %327 = vmatpush1.bf16.msra.mxu0 0
  %328 = vmatprep.subr.bf16.mxu0 0
  %329 = vmatpush1.bf16.msra.mxu0 0
  %330 = vmatprep.subr.bf16.mxu0 0
  %331 = vmatpush1.bf16.msra.mxu0 0
  %332 = vmatprep.subr.bf16.mxu0 0
  %333 = vmatpush1.bf16.msra.mxu0 0
  %334 = vmatprep.subr.bf16.mxu0 0
  %335 = vmatpush1.bf16.msra.mxu0 0
  %336 = vmatprep.subr.bf16.mxu0 0
  %337 = vmatpush1.bf16.msra.mxu0 0
  %338 = vmatprep.subr.bf16.mxu0 0
  %339 = vmatpush1.bf16.msra.mxu0 0
  %340 = vmatprep.subr.bf16.mxu0 0
  %341 = vmatpush1.bf16.msra.mxu0 0
  %342 = vmatprep.subr.bf16.mxu0 0
  %343 = vmatpush1.bf16.msra.mxu0 0
  %344 = vmatprep.subr.bf16.mxu0 0
  %345 = vmatpush1.bf16.msra.mxu0 0
  %346 = vmatprep.subr.bf16.mxu0 0
  %347 = vmatpush1.bf16.msra.mxu0 0
  %348 = vmatprep.mubr.bf16.mxu0 0
  %349 = vmatmul.mubr.bf16.gmra.mrb[0].mxu0 %v314
  %v350 = vpop.f32.mrb[0].mxu0
  %v351 = vadd.f32 0.0, %v350
  %v352 = vpop.f32.mrb[0].mxu0
  %v353 = vpop.f32.mrb[0].mxu0
  %v354 = vadd.f32 0.0, %v353
  %v355 = vpop.f32.mrb[0].mxu0
  %356 = vdwg.mxu0
  %v357 = vadd.f32 %v204, %v302
  %v358 = vadd.f32 %v207, %v305
  %v359 = vadd.f32 %v247, %v351
  %v360 = vadd.f32 %v250, %v354
  %vm361 = vcmask 64512
  %362 = vst.msk [vmem:[%s2] sm:$0xff] %vm361, %v357
  %363 = vst.msk [vmem:[%s2 + $0x8] sm:$0xff] %vm361, %v358
  %364 = vst.msk [vmem:[%s2 + $0x10] sm:$0xff] %vm361, %v359
  %365 = vst.msk [vmem:[%s2 + $0x18] sm:$0xff] %vm361, %v360
  // Predicated region
  $region10: #{tpu_custom_call.1} parent=0 // pred_check
    _
  $region11: #{tpu_custom_call.1} parent=0 // pred_check_branch
    %367 = sbr.rel (0) target = $region13
  $region12: #{tpu_custom_call.1} parent=0 // pred_region
    _
  $region13: #{tpu_custom_call.1} parent=0 // pred_fallthru
    _
  // Predicated region
  $region14: #{tpu_custom_call.1} parent=0 // pred_check
    _
  $region15: #{tpu_custom_call.1} parent=0 // pred_check_branch
    %369 = sbr.rel (0) target = $region17
  $region16: #{tpu_custom_call.1} parent=0 // pred_region
    _
  $region17: #{tpu_custom_call.1} parent=0 // pred_fallthru
    _

</llo_original>
